<compile_context>
chip_gen: v5e
topology: v5e:2x2
jax: 0.10.0
libtpu: 0.0.40
codegen_flags: <defaults>
</compile_context>

<pallas_src>
import functools

import jax
import jax.numpy as jnp
from jax.experimental import pallas as pl
from jax.experimental.pallas import tpu as pltpu


def _normalization_kernel(x_ref, o_ref, *, from_raw: bool):
    x = x_ref[...].astype(jnp.float32)
    if from_raw:
        # NOTE: x * (1/127.5) may differ from PyTorch's x / 127.5 by <= 1 ULP
        # (2/255 is not exactly representable in f32); harmless for
        # normalization and well inside the test tolerance.
        o_ref[...] = x * (1.0 / 127.5) - 1.0
    else:
        o_ref[...] = x * 2.0 - 1.0


# Candidate lane widths (widest first) -> long unmasked vst streams and
# minimal per-row addressing overhead.
_LANE_WIDTHS = (16384, 8192, 4096, 2048, 1024, 512, 256, 128)

# Sublane quantum of the *input* dtype (f32: 8, bf16/f16: 16, u8/i8: 32) so
# both the input and f32-output blocks satisfy the (8,128)/packing tiling
# constraints whenever the block does not span the full row dim.
_SUBLANE = {4: 8, 2: 16, 1: 32}


def _vmem_budget():
    """Return (target pipelined bytes per grid step, vmem_limit_bytes).

    Generation-aware: v5e/v6e have 128 MiB physical VMEM -> go big; v7x has
    only 64 MiB per TensorCore -> stay under ~40 MiB pipelined footprint.
    Unknown hardware falls back to the conservative (v7x-safe) numbers.
    """
    cap = None
    try:
        cap = getattr(pltpu.get_tpu_info(), "vmem_capacity_bytes", None)
    except Exception:
        cap = None
    if cap is not None and cap >= 96 * 1024 * 1024:
        # v5e / v6e: ~16-24 MiB output blocks, double-buffered, fits easily.
        return 64 * 1024 * 1024, 96 * 1024 * 1024
    # v7x (64 MiB physical) or unknown chip.
    return 40 * 1024 * 1024, 48 * 1024 * 1024


def _pick_row_tile(rows: int, width: int, itemsize: int,
                   target_pipeline_bytes: int, in_buffers: int) -> int:
    sub = _SUBLANE.get(itemsize, 8)
    # VMEM bytes one grid step keeps live per element:
    # `in_buffers` copies of the input block + double-buffered f32 output.
    bytes_per_elem = in_buffers * itemsize + 2 * 4
    block_elems = max(sub * width, target_pipeline_bytes // bytes_per_elem)
    tile = max(sub, (block_elems // width) // sub * sub)
    # Guarantee >= 2 grid steps whenever the row dim allows it, so the
    # ("parallel",) axis can be sharded across v7x's two TensorCores.
    # (We deliberately keep "parallel" rather than CORE_PARALLEL so the same
    # kernel compiles cleanly on single-TC v5e/v6e.)
    if rows > sub:
        half = (((rows + 1) // 2) + sub - 1) // sub * sub
        if half < rows:
            tile = min(tile, half)
    return min(rows, tile)


def _run_2d(x2d, from_raw: bool, row_tile: int, vmem_limit: int,
            deep_input_prefetch: bool):
    rows, width = x2d.shape
    itemsize = jnp.dtype(x2d.dtype).itemsize
    grid = (pl.cdiv(rows, row_tile),)

    in_spec = pl.BlockSpec((row_tile, width), lambda i: (i, 0))
    if deep_input_prefetch and grid[0] > 2:
        # Narrow-dtype inputs: the read block is 2-4x smaller than the f32
        # write block, so a third input buffer is near-free VMEM and hides
        # read-DMA jitter behind the (binding) write-back stream.
        try:
            in_spec = pl.BlockSpec((row_tile, width), lambda i: (i, 0),
                                   pipeline_mode=pl.Buffered(3))
        except TypeError:  # older jax without pipeline_mode support
            in_spec = pl.BlockSpec((row_tile, width), lambda i: (i, 0))

    total = rows * width
    cost = pl.CostEstimate(
        flops=2 * total,
        transcendentals=0,
        bytes_accessed=total * (itemsize + 4),
    )

    return pl.pallas_call(
        functools.partial(_normalization_kernel, from_raw=from_raw),
        out_shape=jax.ShapeDtypeStruct((rows, width), jnp.float32),
        grid_spec=pltpu.PrefetchScalarGridSpec(
            num_scalar_prefetch=0,
            grid=grid,
            in_specs=[in_spec],
            out_specs=pl.BlockSpec((row_tile, width), lambda i: (i, 0)),
        ),
        compiler_params=pltpu.CompilerParams(
            # Lets v7x shard the grid across its 2 TensorCores; harmless on
            # single-TC v5e/v6e.
            dimension_semantics=("parallel",),
            vmem_limit_bytes=vmem_limit,
        ),
        cost_estimate=cost,
    )(x2d)


def normalization(x, from_raw: bool = True, *, target_block_bytes: int = None):
    """Elementwise normalization matching the PyTorch module's forward."""
    orig_shape = x.shape
    n = x.size
    if n == 0:
        return x.astype(jnp.float32)

    itemsize = jnp.dtype(x.dtype).itemsize
    target_pipeline_bytes, vmem_limit = _vmem_budget()
    if target_block_bytes is not None:
        target_pipeline_bytes = target_block_bytes
    deep = itemsize < 4            # uint8 / bf16: deepen input prefetch
    in_buffers = 3 if deep else 2  # used for the byte-budget accounting

    flat = x.reshape(-1)

    def _tail_math(t):
        t = t.astype(jnp.float32)
        return t * (1.0 / 127.5) - 1.0 if from_raw else t * 2.0 - 1.0

    # Fast path: widest lane dimension that divides the element count exactly
    # -> no padding copy, no trailing slice.
    width = next((w for w in _LANE_WIDTHS if n % w == 0), None)
    if width is not None:
        rows = n // width
        row_tile = _pick_row_tile(rows, width, itemsize,
                                  target_pipeline_bytes, in_buffers)
        out2d = _run_2d(flat.reshape(rows, width), from_raw, row_tile,
                        vmem_limit, deep)
        return out2d.reshape(orig_shape)

    # Ragged fallback (element count not a multiple of 128): run the
    # 128-aligned bulk through the fast 2-D path and compute the tiny
    # (<128 element) tail with plain jnp -- no jnp.pad / full-array slice.
    bulk = (n // 128) * 128
    if bulk == 0:
        return _tail_math(flat).reshape(orig_shape)
    width = next(w for w in _LANE_WIDTHS if bulk % w == 0)
    rows = bulk // width
    row_tile = _pick_row_tile(rows, width, itemsize,
                              target_pipeline_bytes, in_buffers)
    out_bulk = _run_2d(flat[:bulk].reshape(rows, width), from_raw, row_tile,
                       vmem_limit, deep)
    out_tail = _tail_math(flat[bulk:])
    return jnp.concatenate([out_bulk.reshape(-1), out_tail]).reshape(orig_shape)


if __name__ == "__main__":
    key = jax.random.PRNGKey(0)

    # 1) from_raw=True path: NCHW uint8 image in [0, 255] (in-kernel cast).
    B, C, H, W = 2, 4, 16, 16
    x_raw = jax.random.randint(key, (B, C, H, W), 0, 256, dtype=jnp.int32).astype(
        jnp.uint8
    )
    y = jax.block_until_ready(normalization(x_raw, from_raw=True))
    ref = x_raw.astype(jnp.float32) / 127.5 - 1.0
    assert y.shape == (B, C, H, W) and y.dtype == jnp.float32
    assert jnp.allclose(y, ref, atol=1e-6, rtol=1e-6)

    # 2) from_raw=False path: float input already in [0, 1].
    x01 = jax.random.uniform(jax.random.PRNGKey(1), (B, C, H, W), jnp.float32)
    y2 = jax.block_until_ready(normalization(x01, from_raw=False))
    assert jnp.allclose(y2, x01 * 2.0 - 1.0, atol=1e-6, rtol=1e-6)

    # 3) Multi-step grid with a partial trailing block (forced tiny byte
    #    budget), exercising the non-divisible-grid masking path.
    x3 = jax.random.uniform(jax.random.PRNGKey(2), (2, 4, 20, 20), jnp.float32)
    y3 = jax.block_until_ready(
        normalization(x3, from_raw=False, target_block_bytes=4096)
    )
    assert jnp.allclose(y3, x3 * 2.0 - 1.0, atol=1e-6, rtol=1e-6)

    # 4) Ragged path (n % 128 != 0): 128-aligned bulk via Pallas + jnp tail.
    x4 = jax.random.randint(
        jax.random.PRNGKey(3), (2, 3, 15, 15), 0, 256, dtype=jnp.int32
    ).astype(jnp.uint8)
    y4 = jax.block_until_ready(normalization(x4, from_raw=True))
    ref4 = x4.astype(jnp.float32) / 127.5 - 1.0
    assert y4.shape == (2, 3, 15, 15) and jnp.allclose(y4, ref4, atol=1e-6, rtol=1e-6)

    # 5) Deep-input-prefetch (Buffered(3)) path: uint8 input with >2 grid
    #    steps and a partial trailing block.
    x5 = jax.random.randint(
        jax.random.PRNGKey(4), (2, 4, 20, 52), 0, 256, dtype=jnp.int32
    ).astype(jnp.uint8)
    y5 = jax.block_until_ready(
        normalization(x5, from_raw=True, target_block_bytes=4096)
    )
    ref5 = x5.astype(jnp.float32) / 127.5 - 1.0
    assert jnp.allclose(y5, ref5, atol=1e-6, rtol=1e-6)

    print("KERNEL_OK")
</pallas_src>

<mosaic_0001>
module attributes {stable_mosaic.version = 11 : i64} {
  func.func @_normalization_kernel(%arg0: i32, %arg1: memref<1x2048xi8, #tpu.memory_space<vmem>>, %arg2: memref<1x2048xf32, #tpu.memory_space<vmem>>) attributes {dimension_semantics = [#tpu.dimension_semantics<parallel>], iteration_bounds = array<i64: 1>, scalar_prefetch = 0 : i64, scratch_operands = 0 : i64, tpu.core_type = #tpu.core_type<tc>, window_params = [{transform_indices = @transform_0, window_bounds = array<i64: 1, 2048>}, {transform_indices = @transform_1, window_bounds = array<i64: 1, 2048>}]} {
    %c0 = arith.constant 0 : index
    %c0_0 = arith.constant 0 : index
    %0 = vector.load %arg1[%c0, %c0_0] : memref<1x2048xi8, #tpu.memory_space<vmem>>, vector<1x2048xi8>
    %1 = arith.uitofp %0 : vector<1x2048xi8> to vector<1x2048xf32>
    %cst = arith.constant 0.00784313772 : f32
    %2 = vector.broadcast %cst : f32 to vector<1x2048xf32>
    %3 = arith.mulf %1, %2 : vector<1x2048xf32>
    %cst_1 = arith.constant 1.000000e+00 : f32
    %4 = vector.broadcast %cst_1 : f32 to vector<1x2048xf32>
    %5 = arith.subf %3, %4 : vector<1x2048xf32>
    %c0_2 = arith.constant 0 : index
    %c0_3 = arith.constant 0 : index
    %6 = vector.load %arg2[%c0_2, %c0_3] : memref<1x2048xf32, #tpu.memory_space<vmem>>, vector<1x2048xf32>
    tpu.vector_store %arg2[%c0_2, %c0_3], %5 {strides = array<i32>} : memref<1x2048xf32, #tpu.memory_space<vmem>>, vector<1x2048xf32>,
    return
  }
  func.func @transform_0(%arg0: i32) -> (i32, i32) {
    %c0_i32 = arith.constant 0 : i32
    %c0_i32_0 = arith.constant 0 : i32
    return %arg0, %c0_i32 : i32, i32
  }
  func.func @transform_1(%arg0: i32) -> (i32, i32) {
    %c0_i32 = arith.constant 0 : i32
    %c0_i32_0 = arith.constant 0 : i32
    return %arg0, %c0_i32 : i32, i32
  }
}

</mosaic_0001>

<llo_original>
// kernel: tpu_custom_call.1
$region0: #{tpu_custom_call.1}
  #allocation0 [shape = 'u32[]', space=smem, size = 0x4, offset = 0x4, fixed_abs, tag = 'smem constant byte address 0x4 - core index']
  #allocation1 [shape = 'u32[72,128]{1,0:T(1,128)}', space=vmem, size = 0x9000, scoped, tag = 'internal scratch']
  %s0 = inlined_call_operand.hbm [shape: u8[1,2048], index: 0, kind: input, shape index: {}]
  %s1 = inlined_call_operand.hbm [shape: f32[1,2048], index: 1, kind: output, shape index: {}]
  %s2 = sld [smem:[#allocation0]]
  $region18: #{tpu_custom_call.1} parent=0
    _
  %s4 = ssub.s32 1, %s2
  %s5 = scalar_select 0, %s4, %s2
  $region1: #{tpu_custom_call.1} parent=0
    #allocation2 [shape = 'u8[8192]{0}', space=vmem, size = 0x2000, scoped, tag = 'input window, operand 0, single buffered']
    #allocation3 [shape = 's32[1]{0}', space=sflag, size = 0x4, scoped, tag = 'scoped memory for tpu_custom_call.1']
    #allocation4 [shape = 's32[1]{0}', space=sflag, size = 0x4, scoped, tag = 'scoped memory for tpu_custom_call.1']
    #allocation5 [shape = 'u8[8192]{0}', space=vmem, size = 0x2000, scoped, tag = 'output window, operand 0, single buffered']
    %6 = vsyncpa [#allocation3], 0
    %7 = vsyncpa [#allocation4], 0
    // Predicated region
    $region2: #{tpu_custom_call.1} parent=1 // pred_check
      _
    $region3: #{tpu_custom_call.1} parent=1 // pred_check_branch
      %9 = sbr.rel (0) target = $region5
    $region4: #{tpu_custom_call.1} parent=1 // pred_region
      %11 = vsyncadd [#allocation3], 0
      %s13 = sshll.u32 %s0, 4
      %s14 = int_to_ptr.hbm [resolvable:$true] %s13
      %s15 = sshll.u32 [#allocation2], 4
      %s16 = int_to_ptr.vmem [resolvable:$true] %s15
      %18 = dma.hbm_to_vmem [thread:$0]  %s14, 256, %s16, [#allocation3]
    $region5: #{tpu_custom_call.1} parent=1 // pred_fallthru
      _
    // Predicated region
    $region6: #{tpu_custom_call.1} parent=1 // pred_check
      _
    $region7: #{tpu_custom_call.1} parent=1 // pred_check_branch
      %20 = sbr.rel (0) target = $region9
    $region8: #{tpu_custom_call.1} parent=1 // pred_region
      %22 = dma.done [#allocation3], 256
    $region9: #{tpu_custom_call.1} parent=1 // pred_fallthru
      _
    %v23 = vld [vmem:[#allocation2] sm:$0xff]
    %v24 = vld [vmem:[#allocation2 + $0x8] sm:$0xff]
    %v25 = vunpack.c.0.s8 %v23
    %v26 = vunpack.c.1.s8 %v23
    %v27 = vunpack.c.2.s8 %v23
    %v28 = vunpack.c.3.s8 %v23
    %v29 = vunpack.c.0.s8 %v24
    %v30 = vunpack.c.1.s8 %v24
    %v31 = vunpack.c.2.s8 %v24
    %v32 = vunpack.c.3.s8 %v24
    %v33 = vand.u32 %v25, 255
    %v34 = vand.u32 %v26, 255
    %v35 = vand.u32 %v27, 255
    %v36 = vand.u32 %v28, 255
    %v37 = vand.u32 %v29, 255
    %v38 = vand.u32 %v30, 255
    %v39 = vand.u32 %v31, 255
    %v40 = vand.u32 %v32, 255
    %v41 = vcvt.s32.f32 %v33
    %v42 = vcvt.s32.f32 %v34
    %v43 = vcvt.s32.f32 %v35
    %v44 = vcvt.s32.f32 %v36
    %v45 = vcvt.s32.f32 %v37
    %v46 = vcvt.s32.f32 %v38
    %v47 = vcvt.s32.f32 %v39
    %v48 = vcvt.s32.f32 %v40
    %v49 = vmul.f32 %v41, 0.007843138
    %v50 = vmul.f32 %v42, 0.007843138
    %v51 = vmul.f32 %v43, 0.007843138
    %v52 = vmul.f32 %v44, 0.007843138
    %v53 = vmul.f32 %v45, 0.007843138
    %v54 = vmul.f32 %v46, 0.007843138
    %v55 = vmul.f32 %v47, 0.007843138
    %v56 = vmul.f32 %v48, 0.007843138
    %v57 = vsub.f32 %v49, 1.0
    %v58 = vsub.f32 %v50, 1.0
    %v59 = vsub.f32 %v51, 1.0
    %v60 = vsub.f32 %v52, 1.0
    %v61 = vsub.f32 %v53, 1.0
    %v62 = vsub.f32 %v54, 1.0
    %v63 = vsub.f32 %v55, 1.0
    %v64 = vsub.f32 %v56, 1.0
    %v73 = vrot.slane %v57, 3
    %v74 = vrot.slane %v58, 6
    %v75 = vrot.slane %v58, 1
    %v76 = vrot.slane %v59, 4
    %v77 = vrot.slane %v59, 7
    %v78 = vrot.slane %v60, 2
    %v79 = vrot.slane %v60, 5
    %v80 = vrot.slane %v61, 3
    %v81 = vrot.slane %v62, 6
    %v82 = vrot.slane %v62, 1
    %v83 = vrot.slane %v63, 4
    %v84 = vrot.slane %v63, 7
    %v85 = vrot.slane %v64, 2
    %v86 = vrot.slane %v64, 5
    %vm87 = vcmask 1040384
    %v88 = vsel %vm87, %v57, %v73
    %vm89 = vcmask 1042434
    %v90 = vsel %vm89, %v74, %v75
    %vm91 = vcmask 1041408
    %v92 = vsel %vm91, %v88, %v90
    %vm93 = vcmask 1044484
    %v94 = vsel %vm93, %v76, %v77
    %vm95 = vcmask 1046534
    %v96 = vsel %vm95, %v78, %v79
    %vm97 = vcmask 1045508
    %v98 = vsel %vm97, %v94, %v96
    %vm99 = vcmask 1043456
    %v100 = vsel %vm99, %v92, %v98
    %v101 = vsel %vm87, %v61, %v80
    %v102 = vsel %vm89, %v81, %v82
    %v103 = vsel %vm91, %v101, %v102
    %v104 = vsel %vm93, %v83, %v84
    %v105 = vsel %vm95, %v85, %v86
    %v106 = vsel %vm97, %v104, %v105
    %v107 = vsel %vm99, %v103, %v106
    %110 = vst [vmem:[#allocation5] sm:$0xff] %v100
    %111 = vst [vmem:[#allocation5 + $0x8] sm:$0xff] %v107
    // Predicated region
    $region10: #{tpu_custom_call.1} parent=1 // pred_check
      _
    $region11: #{tpu_custom_call.1} parent=1 // pred_check_branch
      %113 = sbr.rel (0) target = $region13
    $region12: #{tpu_custom_call.1} parent=1 // pred_region
      %115 = vsyncadd [#allocation4], 0
      %s117 = sshll.u32 [#allocation5], 4
      %s118 = int_to_ptr.vmem [resolvable:$true] %s117
      %s119 = sshll.u32 %s1, 4
      %s120 = int_to_ptr.hbm [resolvable:$true] %s119
      %122 = dma.vmem_to_hbm [thread:$0]  %s118, 256, %s120, [#allocation4]
    $region13: #{tpu_custom_call.1} parent=1 // pred_fallthru
      _
    // Predicated region
    $region14: #{tpu_custom_call.1} parent=1 // pred_check
      _
    $region15: #{tpu_custom_call.1} parent=1 // pred_check_branch
      %124 = sbr.rel (0) target = $region17
    $region16: #{tpu_custom_call.1} parent=1 // pred_region
      %126 = dma.done [#allocation4], 256
    $region17: #{tpu_custom_call.1} parent=1 // pred_fallthru
      _
    %127 = vsyncpa [#allocation3], 1
    %128 = vsyncpa [#allocation4], 1

</llo_original>
